<compile_context>
chip_gen: v5e
topology: v5e:2x2
jax: 0.10.0
libtpu: 0.0.40
codegen_flags: <defaults>
</compile_context>

<pallas_src>
from functools import partial

import jax
import jax.numpy as jnp
from jax.experimental import pallas as pl
from jax.experimental.pallas import tpu as pltpu


def _round_up(x, m):
    return ((x + m - 1) // m) * m


def _complex_conv1d_kernel(xr_ref, xi_ref, wr_ref, wi_ref, br_ref, bi_ref,
                           or_ref, oi_ref, *, K, TL, WIDE, Bn):
    """One (batch-block, L-tile) step of the fused real/imag valid conv1d.

    xr_ref / xi_ref : (Bn, C_in, L_in_pad)  full padded rows, VMEM resident
    wr_ref / wi_ref : (C_out, K*C_in)       tap-folded weights
    br_ref / bi_ref : (C_out, 1)            bias (f32)
    or_ref / oi_ref : (Bn, C_out, TL)       lane-dense output tiles
    """
    # 128-aligned element offset of this output tile along L_out.
    start = pl.multiple_of(pl.program_id(1) * TL, 128)

    wr = wr_ref[...]                      # native dtype straight to the MXU
    wi = wi_ref[...]
    br = br_ref[...]                      # (C_out, 1) f32
    bi = bi_ref[...]

    for b in range(Bn):                   # small static unroll over batch rows
        # One aligned wide load per stream; k-shifted tap windows are static
        # in-vreg slices of it (XLU shifts, no extra vld traffic).
        xw_r = xr_ref[b, :, pl.ds(start, WIDE)]       # (C_in, WIDE)
        xw_i = xi_ref[b, :, pl.ds(start, WIDE)]
        xs_r = jnp.concatenate([xw_r[:, k:k + TL] for k in range(K)], axis=0)
        xs_i = jnp.concatenate([xw_i[:, k:k + TL] for k in range(K)], axis=0)

        # Single MXU dot per stream (contraction dim K*C_in), f32 accumulate,
        # bias fused into the epilogue, one unmasked store per stream.
        or_ref[b] = (jnp.dot(wr, xs_r, preferred_element_type=jnp.float32)
                     + br).astype(or_ref.dtype)
        oi_ref[b] = (jnp.dot(wi, xs_i, preferred_element_type=jnp.float32)
                     + bi).astype(oi_ref.dtype)


def complex_conv1d_pallas(x_real, x_imag, wk_real, wk_imag, b_real, b_imag):
    """Fused real/imag valid conv1d.

    x_real, x_imag  : (N, C_in, L)
    wk_real/wk_imag : (C_out, K*C_in)   tap-folded layout, rows ordered (k, c_in)
    b_real, b_imag  : (C_out, 1)        float32
    returns         : two arrays of shape (N, C_out, L - K + 1)
    """
    N, C_in, L = x_real.shape
    C_out, KCin = wk_real.shape
    K = KCin // C_in
    assert KCin == K * C_in
    assert L >= K, "input length must be >= kernel size (valid conv)"
    L_out = L - K + 1

    x_item = jnp.dtype(x_real.dtype).itemsize
    w_item = jnp.dtype(wk_real.dtype).itemsize

    # Per-generation VMEM capacity (v7x: 64 MiB/TC, v5e/v6e: 128 MiB).
    try:
        vmem_cap = int(pltpu.get_tpu_info().vmem_capacity_bytes)
    except Exception:
        vmem_cap = 64 << 20

    # ---- output L tiling: lane-dense multiple of 128 ------------------------
    tl_cap = 1024 if vmem_cap >= (96 << 20) else 512
    TL = 128
    for cand in (1024, 512, 256, 128):
        # Keep the two f32 (C_out, TL) result tiles within vreg-friendly budget.
        if cand <= tl_cap and 2 * C_out * cand * 4 <= (128 << 10):
            TL = cand
            break
    TL = min(TL, _round_up(L_out, 128))
    n_lt = pl.cdiv(L_out, TL)

    # ---- input padding: every tile reads one aligned wide window ------------
    PADK = _round_up(K - 1, 128) if K > 1 else 0
    WIDE = TL + PADK
    L_in_pad = n_lt * TL + PADK
    if L_in_pad != L:
        pad = ((0, 0), (0, 0), (0, L_in_pad - L))
        x_real = jnp.pad(x_real, pad)
        x_imag = jnp.pad(x_imag, pad)

    # ---- batch blocking: amortize per-step overhead for small channels ------
    per_b = 2 * (C_in * L_in_pad * x_item + C_out * TL * x_item)
    Bn = 1
    for cand in (8, 4, 2):
        if N % cand == 0 and cand * per_b <= vmem_cap // 8:
            Bn = cand
            break
    # TODO(synk): halo-tiled x BlockSpec (pl.Element windows / manual DMA) for
    # very long L where the resident (Bn, C_in, L_in_pad) row would not fit VMEM.

    x_spec = pl.BlockSpec((Bn, C_in, L_in_pad), lambda n, j: (n, 0, 0))
    w_spec = pl.BlockSpec((C_out, KCin), lambda n, j: (0, 0))
    b_spec = pl.BlockSpec((C_out, 1), lambda n, j: (0, 0))
    o_spec = pl.BlockSpec((Bn, C_out, TL), lambda n, j: (n, 0, j))

    # VMEM budget: double-buffered x rows + output tiles, weights/bias, slack.
    blk_bytes = (2 * 2 * Bn * C_in * L_in_pad * x_item        # both x streams, 2 bufs
                 + 2 * 2 * Bn * C_out * TL * x_item           # both out streams, 2 bufs
                 + 2 * max(C_out, 8) * max(KCin, 128) * w_item
                 + 2 * 8 * 128 * 4)                           # padded bias vregs
    vmem_budget = int(min(max(2 * blk_bytes + (4 << 20), 32 << 20),
                          vmem_cap * 3 // 4))

    kernel = partial(_complex_conv1d_kernel, K=K, TL=TL, WIDE=WIDE, Bn=Bn)

    out_r, out_i = pl.pallas_call(
        kernel,
        out_shape=(
            jax.ShapeDtypeStruct((N, C_out, L_out), x_real.dtype),
            jax.ShapeDtypeStruct((N, C_out, L_out), x_imag.dtype),
        ),
        grid=(N // Bn, n_lt),
        in_specs=[x_spec, x_spec, w_spec, w_spec, b_spec, b_spec],
        out_specs=(o_spec, o_spec),
        compiler_params=pltpu.CompilerParams(
            dimension_semantics=("parallel", "parallel"),
            vmem_limit_bytes=vmem_budget,
        ),
    )(x_real, x_imag, wk_real, wk_imag, b_real, b_imag)

    return out_r, out_i


def dirac_weight(out_channels, in_channels, kernel_size, dtype=jnp.float32):
    """Matches torch.nn.init.dirac_ for a Conv1d weight (groups=1): OIK layout."""
    w = jnp.zeros((out_channels, in_channels, kernel_size), dtype)
    m = min(out_channels, in_channels)
    idx = jnp.arange(m)
    return w.at[idx, idx, kernel_size // 2].set(1.0)


class ComplexConv1dPallas:
    """Pallas equivalent of the PyTorch ComplexConv1d module (forward pass)."""

    def __init__(self, in_channels, out_channels, kernel_size, key):
        self.w_real = dirac_weight(out_channels, in_channels, kernel_size)
        self.w_imag = dirac_weight(out_channels, in_channels, kernel_size)
        # nn.Conv1d default bias init: U(-1/sqrt(fan_in), 1/sqrt(fan_in)),
        # reproduced deterministically with a fixed JAX PRNG key.
        fan_in = in_channels * kernel_size
        bound = 1.0 / (fan_in ** 0.5)
        k1, k2 = jax.random.split(key)
        self.b_real = jax.random.uniform(k1, (out_channels,), jnp.float32,
                                         -bound, bound)
        self.b_imag = jax.random.uniform(k2, (out_channels,), jnp.float32,
                                         -bound, bound)
        # Tap-folded kernel layout (C_out, K*C_in), rows ordered (k, c_in),
        # precomputed once (no per-call transposes).
        kc = kernel_size * in_channels
        self.wk_real = jnp.transpose(self.w_real, (0, 2, 1)).reshape(out_channels, kc)
        self.wk_imag = jnp.transpose(self.w_imag, (0, 2, 1)).reshape(out_channels, kc)
        self.bk_real = self.b_real.reshape(out_channels, 1)
        self.bk_imag = self.b_imag.reshape(out_channels, 1)

    def __call__(self, x_real, x_imag):
        # Feed weights in the activation dtype so bf16 inputs hit the native
        # bf16 MXU path (no in-kernel up-casts). Bias stays f32 (accumulator).
        dt = x_real.dtype
        return complex_conv1d_pallas(x_real, x_imag,
                                     self.wk_real.astype(dt),
                                     self.wk_imag.astype(dt),
                                     self.bk_real, self.bk_imag)


def _conv1d_ref(x, w, b):
    out = jax.lax.conv_general_dilated(
        x, w, window_strides=(1,), padding="VALID",
        dimension_numbers=("NCH", "OIH", "NCH"))
    return out + b[None, :, None]


if __name__ == "__main__":
    key = jax.random.PRNGKey(0)
    k_param, k_real, k_imag = jax.random.split(key, 3)

    N, C_in, C_out, L, K = 2, 4, 4, 16, 3

    x_real = jax.random.normal(k_real, (N, C_in, L), jnp.float32)
    x_imag = jax.random.normal(k_imag, (N, C_in, L), jnp.float32)

    module = ComplexConv1dPallas(C_in, C_out, K, k_param)
    real_out, imag_out = module(x_real, x_imag)
    jax.block_until_ready((real_out, imag_out))

    # Correctness check against XLA's conv.
    ref_real = _conv1d_ref(x_real, module.w_real, module.b_real)
    ref_imag = _conv1d_ref(x_imag, module.w_imag, module.b_imag)
    assert real_out.shape == (N, C_out, L - K + 1)
    assert imag_out.shape == (N, C_out, L - K + 1)
    assert jnp.allclose(real_out, ref_real, atol=1e-5, rtol=1e-5)
    assert jnp.allclose(imag_out, ref_imag, atol=1e-5, rtol=1e-5)

    print("KERNEL_OK")
</pallas_src>

<mosaic_0001>
module attributes {stable_mosaic.version = 11 : i64} {
  func.func @_complex_conv1d_kernel(%arg0: i32, %arg1: i32, %arg2: memref<2x4x256xf32, #tpu.memory_space<vmem>>, %arg3: memref<2x4x256xf32, #tpu.memory_space<vmem>>, %arg4: memref<4x12xf32, #tpu.memory_space<vmem>>, %arg5: memref<4x12xf32, #tpu.memory_space<vmem>>, %arg6: memref<4x1xf32, #tpu.memory_space<vmem>>, %arg7: memref<4x1xf32, #tpu.memory_space<vmem>>, %arg8: memref<2x4x128xf32, #tpu.memory_space<vmem>>, %arg9: memref<2x4x128xf32, #tpu.memory_space<vmem>>) attributes {dimension_semantics = [#tpu.dimension_semantics<parallel>, #tpu.dimension_semantics<parallel>], iteration_bounds = array<i64: 1, 1>, scalar_prefetch = 0 : i64, scratch_operands = 0 : i64, tpu.core_type = #tpu.core_type<tc>, window_params = [{transform_indices = @transform_0, window_bounds = array<i64: 2, 4, 256>}, {transform_indices = @transform_1, window_bounds = array<i64: 2, 4, 256>}, {pipeline_mode = #tpu.pipeline_mode<synchronous>, transform_indices = @transform_2, window_bounds = array<i64: 4, 12>}, {pipeline_mode = #tpu.pipeline_mode<synchronous>, transform_indices = @transform_3, window_bounds = array<i64: 4, 12>}, {pipeline_mode = #tpu.pipeline_mode<synchronous>, transform_indices = @transform_4, window_bounds = array<i64: 4, 1>}, {pipeline_mode = #tpu.pipeline_mode<synchronous>, transform_indices = @transform_5, window_bounds = array<i64: 4, 1>}, {transform_indices = @transform_6, window_bounds = array<i64: 2, 4, 128>}, {transform_indices = @transform_7, window_bounds = array<i64: 2, 4, 128>}]} {
    %c128_i32 = arith.constant 128 : i32
    %0 = arith.muli %arg1, %c128_i32 : i32
    %1 = tpu.assume_multiple %0, 128 : i32
    %c0 = arith.constant 0 : index
    %c0_0 = arith.constant 0 : index
    %2 = vector.load %arg4[%c0, %c0_0] : memref<4x12xf32, #tpu.memory_space<vmem>>, vector<4x12xf32>
    %c0_1 = arith.constant 0 : index
    %c0_2 = arith.constant 0 : index
    %3 = vector.load %arg5[%c0_1, %c0_2] : memref<4x12xf32, #tpu.memory_space<vmem>>, vector<4x12xf32>
    %c0_3 = arith.constant 0 : index
    %c0_4 = arith.constant 0 : index
    %4 = vector.load %arg6[%c0_3, %c0_4] : memref<4x1xf32, #tpu.memory_space<vmem>>, vector<4x1xf32>
    %c0_5 = arith.constant 0 : index
    %c0_6 = arith.constant 0 : index
    %5 = vector.load %arg7[%c0_5, %c0_6] : memref<4x1xf32, #tpu.memory_space<vmem>>, vector<4x1xf32>
    %c0_7 = arith.constant 0 : index
    %c0_8 = arith.constant 0 : index
    %6 = arith.index_cast %1 : i32 to index
    %7 = vector.load %arg2[%c0_7, %c0_8, %6] : memref<2x4x256xf32, #tpu.memory_space<vmem>>, vector<1x4x256xf32>
    %8 = vector.shape_cast %7 : vector<1x4x256xf32> to vector<4x256xf32>
    %c0_9 = arith.constant 0 : index
    %c0_10 = arith.constant 0 : index
    %9 = arith.index_cast %1 : i32 to index
    %10 = vector.load %arg3[%c0_9, %c0_10, %9] : memref<2x4x256xf32, #tpu.memory_space<vmem>>, vector<1x4x256xf32>
    %11 = vector.shape_cast %10 : vector<1x4x256xf32> to vector<4x256xf32>
    %12 = vector.extract_strided_slice %8 {offsets = [0, 0], sizes = [4, 128], strides = [1, 1]} : vector<4x256xf32> to vector<4x128xf32>
    %13 = vector.extract_strided_slice %8 {offsets = [0, 1], sizes = [4, 128], strides = [1, 1]} : vector<4x256xf32> to vector<4x128xf32>
    %14 = vector.extract_strided_slice %8 {offsets = [0, 2], sizes = [4, 128], strides = [1, 1]} : vector<4x256xf32> to vector<4x128xf32>
    %15 = tpu.concatenate %12, %13, %14 in 0 : vector<4x128xf32>, vector<4x128xf32>, vector<4x128xf32> -> vector<12x128xf32>
    %16 = vector.extract_strided_slice %11 {offsets = [0, 0], sizes = [4, 128], strides = [1, 1]} : vector<4x256xf32> to vector<4x128xf32>
    %17 = vector.extract_strided_slice %11 {offsets = [0, 1], sizes = [4, 128], strides = [1, 1]} : vector<4x256xf32> to vector<4x128xf32>
    %18 = vector.extract_strided_slice %11 {offsets = [0, 2], sizes = [4, 128], strides = [1, 1]} : vector<4x256xf32> to vector<4x128xf32>
    %19 = tpu.concatenate %16, %17, %18 in 0 : vector<4x128xf32>, vector<4x128xf32>, vector<4x128xf32> -> vector<12x128xf32>
    %cst = arith.constant dense<0.000000e+00> : vector<4x128xf32>
    %20 = tpu.matmul %2, %15, %cst {dimension_numbers = #tpu.dot_dimension_numbers<[1], [0], [0], [1], [0, 0, 1, 1], [], []>} : vector<4x12xf32>, vector<12x128xf32>, vector<4x128xf32> -> vector<4x128xf32>
    %21 = vector.broadcast %4 : vector<4x1xf32> to vector<4x128xf32>
    %22 = arith.addf %20, %21 : vector<4x128xf32>
    %c0_11 = arith.constant 0 : index
    %c0_12 = arith.constant 0 : index
    %c0_13 = arith.constant 0 : index
    %23 = vector.load %arg8[%c0_11, %c0_12, %c0_13] : memref<2x4x128xf32, #tpu.memory_space<vmem>>, vector<1x4x128xf32>
    %24 = vector.shape_cast %23 : vector<1x4x128xf32> to vector<4x128xf32>
    %25 = vector.shape_cast %22 : vector<4x128xf32> to vector<1x4x128xf32>
    tpu.vector_store %arg8[%c0_11, %c0_12, %c0_13], %25 {strides = array<i32>} : memref<2x4x128xf32, #tpu.memory_space<vmem>>, vector<1x4x128xf32>,
    %cst_14 = arith.constant dense<0.000000e+00> : vector<4x128xf32>
    %26 = tpu.matmul %3, %19, %cst_14 {dimension_numbers = #tpu.dot_dimension_numbers<[1], [0], [0], [1], [0, 0, 1, 1], [], []>} : vector<4x12xf32>, vector<12x128xf32>, vector<4x128xf32> -> vector<4x128xf32>
    %27 = vector.broadcast %5 : vector<4x1xf32> to vector<4x128xf32>
    %28 = arith.addf %26, %27 : vector<4x128xf32>
    %c0_15 = arith.constant 0 : index
    %c0_16 = arith.constant 0 : index
    %c0_17 = arith.constant 0 : index
    %29 = vector.load %arg9[%c0_15, %c0_16, %c0_17] : memref<2x4x128xf32, #tpu.memory_space<vmem>>, vector<1x4x128xf32>
    %30 = vector.shape_cast %29 : vector<1x4x128xf32> to vector<4x128xf32>
    %31 = vector.shape_cast %28 : vector<4x128xf32> to vector<1x4x128xf32>
    tpu.vector_store %arg9[%c0_15, %c0_16, %c0_17], %31 {strides = array<i32>} : memref<2x4x128xf32, #tpu.memory_space<vmem>>, vector<1x4x128xf32>,
    %c1 = arith.constant 1 : index
    %c0_18 = arith.constant 0 : index
    %32 = arith.index_cast %1 : i32 to index
    %33 = vector.load %arg2[%c1, %c0_18, %32] : memref<2x4x256xf32, #tpu.memory_space<vmem>>, vector<1x4x256xf32>
    %34 = vector.shape_cast %33 : vector<1x4x256xf32> to vector<4x256xf32>
    %c1_19 = arith.constant 1 : index
    %c0_20 = arith.constant 0 : index
    %35 = arith.index_cast %1 : i32 to index
    %36 = vector.load %arg3[%c1_19, %c0_20, %35] : memref<2x4x256xf32, #tpu.memory_space<vmem>>, vector<1x4x256xf32>
    %37 = vector.shape_cast %36 : vector<1x4x256xf32> to vector<4x256xf32>
    %38 = vector.extract_strided_slice %34 {offsets = [0, 0], sizes = [4, 128], strides = [1, 1]} : vector<4x256xf32> to vector<4x128xf32>
    %39 = vector.extract_strided_slice %34 {offsets = [0, 1], sizes = [4, 128], strides = [1, 1]} : vector<4x256xf32> to vector<4x128xf32>
    %40 = vector.extract_strided_slice %34 {offsets = [0, 2], sizes = [4, 128], strides = [1, 1]} : vector<4x256xf32> to vector<4x128xf32>
    %41 = tpu.concatenate %38, %39, %40 in 0 : vector<4x128xf32>, vector<4x128xf32>, vector<4x128xf32> -> vector<12x128xf32>
    %42 = vector.extract_strided_slice %37 {offsets = [0, 0], sizes = [4, 128], strides = [1, 1]} : vector<4x256xf32> to vector<4x128xf32>
    %43 = vector.extract_strided_slice %37 {offsets = [0, 1], sizes = [4, 128], strides = [1, 1]} : vector<4x256xf32> to vector<4x128xf32>
    %44 = vector.extract_strided_slice %37 {offsets = [0, 2], sizes = [4, 128], strides = [1, 1]} : vector<4x256xf32> to vector<4x128xf32>
    %45 = tpu.concatenate %42, %43, %44 in 0 : vector<4x128xf32>, vector<4x128xf32>, vector<4x128xf32> -> vector<12x128xf32>
    %cst_21 = arith.constant dense<0.000000e+00> : vector<4x128xf32>
    %46 = tpu.matmul %2, %41, %cst_21 {dimension_numbers = #tpu.dot_dimension_numbers<[1], [0], [0], [1], [0, 0, 1, 1], [], []>} : vector<4x12xf32>, vector<12x128xf32>, vector<4x128xf32> -> vector<4x128xf32>
    %47 = vector.broadcast %4 : vector<4x1xf32> to vector<4x128xf32>
    %48 = arith.addf %46, %47 : vector<4x128xf32>
    %c1_22 = arith.constant 1 : index
    %c0_23 = arith.constant 0 : index
    %c0_24 = arith.constant 0 : index
    %49 = vector.load %arg8[%c1_22, %c0_23, %c0_24] : memref<2x4x128xf32, #tpu.memory_space<vmem>>, vector<1x4x128xf32>
    %50 = vector.shape_cast %49 : vector<1x4x128xf32> to vector<4x128xf32>
    %51 = vector.shape_cast %48 : vector<4x128xf32> to vector<1x4x128xf32>
    tpu.vector_store %arg8[%c1_22, %c0_23, %c0_24], %51 {strides = array<i32>} : memref<2x4x128xf32, #tpu.memory_space<vmem>>, vector<1x4x128xf32>,
    %cst_25 = arith.constant dense<0.000000e+00> : vector<4x128xf32>
    %52 = tpu.matmul %3, %45, %cst_25 {dimension_numbers = #tpu.dot_dimension_numbers<[1], [0], [0], [1], [0, 0, 1, 1], [], []>} : vector<4x12xf32>, vector<12x128xf32>, vector<4x128xf32> -> vector<4x128xf32>
    %53 = vector.broadcast %5 : vector<4x1xf32> to vector<4x128xf32>
    %54 = arith.addf %52, %53 : vector<4x128xf32>
    %c1_26 = arith.constant 1 : index
    %c0_27 = arith.constant 0 : index
    %c0_28 = arith.constant 0 : index
    %55 = vector.load %arg9[%c1_26, %c0_27, %c0_28] : memref<2x4x128xf32, #tpu.memory_space<vmem>>, vector<1x4x128xf32>
    %56 = vector.shape_cast %55 : vector<1x4x128xf32> to vector<4x128xf32>
    %57 = vector.shape_cast %54 : vector<4x128xf32> to vector<1x4x128xf32>
    tpu.vector_store %arg9[%c1_26, %c0_27, %c0_28], %57 {strides = array<i32>} : memref<2x4x128xf32, #tpu.memory_space<vmem>>, vector<1x4x128xf32>,
    return
  }
  func.func @transform_0(%arg0: i32, %arg1: i32) -> (i32, i32, i32) {
    %c0_i32 = arith.constant 0 : i32
    %c0_i32_0 = arith.constant 0 : i32
    %c0_i32_1 = arith.constant 0 : i32
    return %arg0, %c0_i32, %c0_i32_0 : i32, i32, i32
  }
  func.func @transform_1(%arg0: i32, %arg1: i32) -> (i32, i32, i32) {
    %c0_i32 = arith.constant 0 : i32
    %c0_i32_0 = arith.constant 0 : i32
    %c0_i32_1 = arith.constant 0 : i32
    return %arg0, %c0_i32, %c0_i32_0 : i32, i32, i32
  }
  func.func @transform_2(%arg0: i32, %arg1: i32) -> (i32, i32) {
    %c0_i32 = arith.constant 0 : i32
    %c0_i32_0 = arith.constant 0 : i32
    %c0_i32_1 = arith.constant 0 : i32
    return %c0_i32, %c0_i32_0 : i32, i32
  }
  func.func @transform_3(%arg0: i32, %arg1: i32) -> (i32, i32) {
    %c0_i32 = arith.constant 0 : i32
    %c0_i32_0 = arith.constant 0 : i32
    %c0_i32_1 = arith.constant 0 : i32
    return %c0_i32, %c0_i32_0 : i32, i32
  }
  func.func @transform_4(%arg0: i32, %arg1: i32) -> (i32, i32) {
    %c0_i32 = arith.constant 0 : i32
    %c0_i32_0 = arith.constant 0 : i32
    %c0_i32_1 = arith.constant 0 : i32
    return %c0_i32, %c0_i32_0 : i32, i32
  }
  func.func @transform_5(%arg0: i32, %arg1: i32) -> (i32, i32) {
    %c0_i32 = arith.constant 0 : i32
    %c0_i32_0 = arith.constant 0 : i32
    %c0_i32_1 = arith.constant 0 : i32
    return %c0_i32, %c0_i32_0 : i32, i32
  }
  func.func @transform_6(%arg0: i32, %arg1: i32) -> (i32, i32, i32) {
    %c0_i32 = arith.constant 0 : i32
    %c0_i32_0 = arith.constant 0 : i32
    return %arg0, %c0_i32, %arg1 : i32, i32, i32
  }
  func.func @transform_7(%arg0: i32, %arg1: i32) -> (i32, i32, i32) {
    %c0_i32 = arith.constant 0 : i32
    %c0_i32_0 = arith.constant 0 : i32
    return %arg0, %c0_i32, %arg1 : i32, i32, i32
  }
}

</mosaic_0001>

<llo_original>
// kernel: tpu_custom_call.1
$region0: #{tpu_custom_call.1}
  #allocation0 [shape = 'u32[]', space=smem, size = 0x4, offset = 0x4, fixed_abs, tag = 'smem constant byte address 0x4 - core index']
  #allocation1 [shape = 'u32[72,128]{1,0:T(1,128)}', space=vmem, size = 0x9000, scoped, tag = 'internal scratch']
  %s0 = inlined_call_operand.hbm [shape: f32[2,4,256], index: 0, kind: input, shape index: {}]
  %s1 = inlined_call_operand.hbm [shape: f32[2,4,256], index: 1, kind: input, shape index: {}]
  %s2 = inlined_call_operand.vmem [shape: f32[4,12], index: 2, kind: input, shape index: {}]
  %s3 = inlined_call_operand.vmem [shape: f32[4,12], index: 3, kind: input, shape index: {}]
  %s4 = inlined_call_operand.vmem [shape: f32[4,1], index: 4, kind: input, shape index: {}]
  %s5 = inlined_call_operand.vmem [shape: f32[4,1], index: 5, kind: input, shape index: {}]
  %s6 = inlined_call_operand.hbm [shape: f32[2,4,14], index: 6, kind: output, shape index: {0}]
  %s7 = inlined_call_operand.hbm [shape: f32[2,4,14], index: 7, kind: output, shape index: {1}]
  %8 = xla_tuple %s6, %s7
  %s9 = sld [smem:[#allocation0]]
  $region50: #{tpu_custom_call.1} parent=0
    _
  %s11 = ssub.s32 1, %s9
  %s12 = scalar_select 0, %s11, %s9
  $region1: #{tpu_custom_call.1} parent=0
    #allocation2 [shape = 'u8[8192]{0}', space=vmem, size = 0x2000, scoped, tag = 'input window, operand 0, single buffered']
    #allocation3 [shape = 's32[1]{0}', space=sflag, size = 0x4, scoped, tag = 'scoped memory for tpu_custom_call.1']
    #allocation4 [shape = 's32[1]{0}', space=sflag, size = 0x4, scoped, tag = 'scoped memory for tpu_custom_call.1']
    #allocation5 [shape = 'u8[8192]{0}', space=vmem, size = 0x2000, scoped, tag = 'input window, operand 1, single buffered']
    #allocation6 [shape = 's32[1]{0}', space=sflag, size = 0x4, scoped, tag = 'scoped memory for tpu_custom_call.1']
    #allocation7 [shape = 'u8[4096]{0}', space=vmem, size = 0x1000, scoped, tag = 'output window, operand 0, single buffered']
    #allocation8 [shape = 'u8[4096]{0}', space=vmem, size = 0x1000, scoped, tag = 'output window, operand 1, single buffered']
    #allocation9 [shape = 's32[1]{0}', space=sflag, size = 0x4, scoped, tag = 'scoped memory for tpu_custom_call.1']
    %13 = vsyncpa [#allocation3], 0
    %14 = vsyncpa [#allocation6], 0
    %15 = vsyncpa [#allocation4], 0
    %16 = vsyncpa [#allocation9], 0
    // Predicated region
    $region2: #{tpu_custom_call.1} parent=1 // pred_check
      _
    $region3: #{tpu_custom_call.1} parent=1 // pred_check_branch
      %18 = sbr.rel (0) target = $region5
    $region4: #{tpu_custom_call.1} parent=1 // pred_region
      %20 = vsyncadd [#allocation3], 0
      %s21 = sshll.u32 %s0, 4
      %s22 = int_to_ptr.hbm [resolvable:$true] %s21
      %s23 = sshll.u32 [#allocation2], 4
      %s24 = int_to_ptr.vmem [resolvable:$true] %s23
      %29 = dma.hbm_to_vmem [thread:$0]  %s22, 256, %s24, [#allocation3], 128, 128, 8
    $region5: #{tpu_custom_call.1} parent=1 // pred_fallthru
      _
    // Predicated region
    $region6: #{tpu_custom_call.1} parent=1 // pred_check
      _
    $region7: #{tpu_custom_call.1} parent=1 // pred_check_branch
      %31 = sbr.rel (0) target = $region9
    $region8: #{tpu_custom_call.1} parent=1 // pred_region
      %33 = vsyncadd [#allocation6], 0
      %s34 = sshll.u32 %s1, 4
      %s35 = int_to_ptr.hbm [resolvable:$true] %s34
      %s36 = sshll.u32 [#allocation5], 4
      %s37 = int_to_ptr.vmem [resolvable:$true] %s36
      %42 = dma.hbm_to_vmem [thread:$0]  %s35, 256, %s37, [#allocation6], 128, 128, 8
    $region9: #{tpu_custom_call.1} parent=1 // pred_fallthru
      _
    // Predicated region
    $region10: #{tpu_custom_call.1} parent=1 // pred_check
      _
    $region11: #{tpu_custom_call.1} parent=1 // pred_check_branch
      %44 = sbr.rel (0) target = $region13
    $region12: #{tpu_custom_call.1} parent=1 // pred_region
      _
    $region13: #{tpu_custom_call.1} parent=1 // pred_fallthru
      _
    // Predicated region
    $region14: #{tpu_custom_call.1} parent=1 // pred_check
      _
    $region15: #{tpu_custom_call.1} parent=1 // pred_check_branch
      %46 = sbr.rel (0) target = $region17
    $region16: #{tpu_custom_call.1} parent=1 // pred_region
      _
    $region17: #{tpu_custom_call.1} parent=1 // pred_fallthru
      _
    // Predicated region
    $region18: #{tpu_custom_call.1} parent=1 // pred_check
      _
    $region19: #{tpu_custom_call.1} parent=1 // pred_check_branch
      %48 = sbr.rel (0) target = $region21
    $region20: #{tpu_custom_call.1} parent=1 // pred_region
      _
    $region21: #{tpu_custom_call.1} parent=1 // pred_fallthru
      _
    // Predicated region
    $region22: #{tpu_custom_call.1} parent=1 // pred_check
      _
    $region23: #{tpu_custom_call.1} parent=1 // pred_check_branch
      %50 = sbr.rel (0) target = $region25
    $region24: #{tpu_custom_call.1} parent=1 // pred_region
      _
    $region25: #{tpu_custom_call.1} parent=1 // pred_fallthru
      _
    // Predicated region
    $region26: #{tpu_custom_call.1} parent=1 // pred_check
      _
    $region27: #{tpu_custom_call.1} parent=1 // pred_check_branch
      %52 = sbr.rel (0) target = $region29
    $region28: #{tpu_custom_call.1} parent=1 // pred_region
      %54 = dma.done [#allocation3], 256
    $region29: #{tpu_custom_call.1} parent=1 // pred_fallthru
      _
    // Predicated region
    $region30: #{tpu_custom_call.1} parent=1 // pred_check
      _
    $region31: #{tpu_custom_call.1} parent=1 // pred_check_branch
      %56 = sbr.rel (0) target = $region33
    $region32: #{tpu_custom_call.1} parent=1 // pred_region
      %58 = dma.done [#allocation6], 256
    $region33: #{tpu_custom_call.1} parent=1 // pred_fallthru
      _
    %s59 = smul.u32 0, 128
    %v60 = vld [vmem:[%s2] sm:$0xf]
    %v61 = vld [vmem:[%s3] sm:$0xf]
    %v62 = vld [vmem:[%s4] sm:$0xf]
    %v63 = vld [vmem:[%s5] sm:$0xf]
    %s64 = sshra.s32 %s59, 7
    %s65 = sand.u32 %s59, 127
    %s66 = smul.addr %s64, 4
    %s67 = scalar_lea.vmem [#allocation2], %s66
    %v68 = vld [vmem:[%s67] sm:$0xff]
    %s69 = smul.addr %s64, 4
    %s70 = scalar_lea.vmem [#allocation5], %s69
    %v71 = vld [vmem:[%s70] sm:$0xff]
    %s73 = scalar_lea.vmem [#allocation1], 1
    %74 = vst [vmem:[%s73] ss:$2 sm:$0xff] %v68
    %v75 = vld.sshfl [vmem:[#allocation1] sm:$0xff pattern:$0x75316420]
    %v76 = vld.sshfl [vmem:[#allocation1 + $0x8] sm:$0xff pattern:$0x75316420]
    %77 = vrot.lane.b32.xlu0 %v75, 127
    %v78 = vpop.permute.xlu0 %77
    %79 = vrot.lane.b32.xlu0 %v76, 127
    %v80 = vpop.permute.xlu0 %79
    %vm81 = vcmask 1039360
    %v82 = vsel %vm81, %v78, %v80
    %84 = vst [vmem:[#allocation1] ss:$2 sm:$0xff] %v68
    %v85 = vld.sshfl [vmem:[#allocation1] sm:$0xff pattern:$0x75316420]
    %v86 = vld.sshfl [vmem:[#allocation1 + $0x8] sm:$0xff pattern:$0x75316420]
    %87 = vrot.lane.b32.xlu0 %v85, 126
    %v88 = vpop.permute.xlu0 %87
    %89 = vrot.lane.b32.xlu0 %v86, 126
    %v90 = vpop.permute.xlu0 %89
    %vm91 = vcmask 1031168
    %v92 = vsel %vm91, %v88, %v90
    %vm93 = vcmask 1043456
    %v94 = vsel %vm93, %v68, %v82
    %s96 = scalar_lea.vmem [#allocation1], 1
    %97 = vst [vmem:[%s96] ss:$2 sm:$0xff] %v71
    %v98 = vld.sshfl [vmem:[#allocation1] sm:$0xff pattern:$0x75316420]
    %v99 = vld.sshfl [vmem:[#allocation1 + $0x8] sm:$0xff pattern:$0x75316420]
    %100 = vrot.lane.b32.xlu0 %v98, 127
    %v101 = vpop.permute.xlu0 %100
    %102 = vrot.lane.b32.xlu0 %v99, 127
    %v103 = vpop.permute.xlu0 %102
    %v104 = vsel %vm81, %v101, %v103
    %106 = vst [vmem:[#allocation1] ss:$2 sm:$0xff] %v71
    %v107 = vld.sshfl [vmem:[#allocation1] sm:$0xff pattern:$0x75316420]
    %v108 = vld.sshfl [vmem:[#allocation1 + $0x8] sm:$0xff pattern:$0x75316420]
    %109 = vrot.lane.b32.xlu0 %v107, 126
    %v110 = vpop.permute.xlu0 %109
    %111 = vrot.lane.b32.xlu0 %v108, 126
    %v112 = vpop.permute.xlu0 %111
    %v113 = vsel %vm91, %v110, %v112
    %v114 = vsel %vm93, %v71, %v104
    %116 = vset.pattern.permute.xlu0 0
    %117 = vperm.xlu0 %116, %v62
    %v118 = vpop.permute.xlu0 %117
    %vm120 = vcmask 97280
    %v122 = vsel %vm120, %v60, 0
    %v124 = vsel %vm93, %v92, 0
    %126 = vmatpush.msra.mxu0 0.0
    %127 = vmatpush.msra.mxu0 0.0
    %128 = vmatpush.msra.mxu0 0.0
    %129 = vmatpush.msra.mxu0 0.0
    %130 = vmatpush.msra.mxu0 0.0
    %131 = vmatpush.msra.mxu0 0.0
    %132 = vmatpush.msra.mxu0 0.0
    %133 = vmatpush.msra.mxu0 0.0
    %134 = vmatpush.msra.mxu0 0.0
    %135 = vmatpush.msra.mxu0 0.0
    %136 = vmatpush.msra.mxu0 0.0
    %137 = vmatpush.msra.mxu0 0.0
    %138 = vmatpush.msra.mxu0 0.0
    %139 = vmatpush.msra.mxu0 0.0
    %140 = vmatpush.msra.mxu0 %v124
    %141 = vmatpush.msra.mxu0 %v94
    %142 = vmatmul.f32.gmra.mxu0 %v122
    %v143 = vpop.f32.mrf.mxu0
    %v144 = vadd.f32 %v118, %v143
    %145 = vdwg.mxu0
    %146 = vst [vmem:[#allocation7] sm:$0xf] %v144
    %148 = vset.pattern.permute.xlu0 0
    %149 = vperm.xlu0 %148, %v63
    %v150 = vpop.permute.xlu0 %149
    %v153 = vsel %vm120, %v61, 0
    %v155 = vsel %vm93, %v113, 0
    %157 = vmatpush.msra.mxu0 0.0
    %158 = vmatpush.msra.mxu0 0.0
    %159 = vmatpush.msra.mxu0 0.0
    %160 = vmatpush.msra.mxu0 0.0
    %161 = vmatpush.msra.mxu0 0.0
    %162 = vmatpush.msra.mxu0 0.0
    %163 = vmatpush.msra.mxu0 0.0
    %164 = vmatpush.msra.mxu0 0.0
    %165 = vmatpush.msra.mxu0 0.0
    %166 = vmatpush.msra.mxu0 0.0
    %167 = vmatpush.msra.mxu0 0.0
    %168 = vmatpush.msra.mxu0 0.0
    %169 = vmatpush.msra.mxu0 0.0
    %170 = vmatpush.msra.mxu0 0.0
    %171 = vmatpush.msra.mxu0 %v155
    %172 = vmatpush.msra.mxu0 %v114
    %173 = vmatmul.f32.gmra.mxu0 %v153
    %v174 = vpop.f32.mrf.mxu0
    %v175 = vadd.f32 %v150, %v174
    %176 = vdwg.mxu0
    %177 = vst [vmem:[#allocation8] sm:$0xf] %v175
    %s178 = sadd.s32 %s64, 2
    %s179 = smul.addr %s178, 4
    %s180 = scalar_lea.vmem [#allocation2], %s179
    %v181 = vld [vmem:[%s180] sm:$0xff]
    %s182 = smul.addr %s178, 4
    %s183 = scalar_lea.vmem [#allocation5], %s182
    %v184 = vld [vmem:[%s183] sm:$0xff]
    %s186 = scalar_lea.vmem [#allocation1], 1
    %187 = vst [vmem:[%s186] ss:$2 sm:$0xff] %v181
    %v188 = vld.sshfl [vmem:[#allocation1] sm:$0xff pattern:$0x75316420]
    %v189 = vld.sshfl [vmem:[#allocation1 + $0x8] sm:$0xff pattern:$0x75316420]
    %190 = vrot.lane.b32.xlu0 %v188, 127
    %v191 = vpop.permute.xlu0 %190
    %192 = vrot.lane.b32.xlu0 %v189, 127
    %v193 = vpop.permute.xlu0 %192
    %v194 = vsel %vm81, %v191, %v193
    %196 = vst [vmem:[#allocation1] ss:$2 sm:$0xff] %v181
    %v197 = vld.sshfl [vmem:[#allocation1] sm:$0xff pattern:$0x75316420]
    %v198 = vld.sshfl [vmem:[#allocation1 + $0x8] sm:$0xff pattern:$0x75316420]
    %199 = vrot.lane.b32.xlu0 %v197, 126
    %v200 = vpop.permute.xlu0 %199
    %201 = vrot.lane.b32.xlu0 %v198, 126
    %v202 = vpop.permute.xlu0 %201
    %v203 = vsel %vm91, %v200, %v202
    %v204 = vsel %vm93, %v181, %v194
    %s206 = scalar_lea.vmem [#allocation1], 1
    %207 = vst [vmem:[%s206] ss:$2 sm:$0xff] %v184
    %v208 = vld.sshfl [vmem:[#allocation1] sm:$0xff pattern:$0x75316420]
    %v209 = vld.sshfl [vmem:[#allocation1 + $0x8] sm:$0xff pattern:$0x75316420]
    %210 = vrot.lane.b32.xlu0 %v208, 127
    %v211 = vpop.permute.xlu0 %210
    %212 = vrot.lane.b32.xlu0 %v209, 127
    %v213 = vpop.permute.xlu0 %212
    %v214 = vsel %vm81, %v211, %v213
    %216 = vst [vmem:[#allocation1] ss:$2 sm:$0xff] %v184
    %v217 = vld.sshfl [vmem:[#allocation1] sm:$0xff pattern:$0x75316420]
    %v218 = vld.sshfl [vmem:[#allocation1 + $0x8] sm:$0xff pattern:$0x75316420]
    %219 = vrot.lane.b32.xlu0 %v217, 126
    %v220 = vpop.permute.xlu0 %219
    %221 = vrot.lane.b32.xlu0 %v218, 126
    %v222 = vpop.permute.xlu0 %221
    %v223 = vsel %vm91, %v220, %v222
    %v224 = vsel %vm93, %v184, %v214
    %v225 = vsel %vm93, %v203, 0
    %227 = vmatpush.msra.mxu0 0.0
    %228 = vmatpush.msra.mxu0 0.0
    %229 = vmatpush.msra.mxu0 0.0
    %230 = vmatpush.msra.mxu0 0.0
    %231 = vmatpush.msra.mxu0 0.0
    %232 = vmatpush.msra.mxu0 0.0
    %233 = vmatpush.msra.mxu0 0.0
    %234 = vmatpush.msra.mxu0 0.0
    %235 = vmatpush.msra.mxu0 0.0
    %236 = vmatpush.msra.mxu0 0.0
    %237 = vmatpush.msra.mxu0 0.0
    %238 = vmatpush.msra.mxu0 0.0
    %239 = vmatpush.msra.mxu0 0.0
    %240 = vmatpush.msra.mxu0 0.0
    %241 = vmatpush.msra.mxu0 %v225
    %242 = vmatpush.msra.mxu0 %v204
    %243 = vmatmul.f32.gmra.mxu0 %v122
    %v244 = vpop.f32.mrf.mxu0
    %v245 = vadd.f32 %v118, %v244
    %246 = vdwg.mxu0
    %s247 = scalar_lea.vmem [#allocation7], 4
    %248 = vst [vmem:[%s247] sm:$0xf] %v245
    %v249 = vsel %vm93, %v223, 0
    %251 = vmatpush.msra.mxu0 0.0
    %252 = vmatpush.msra.mxu0 0.0
    %253 = vmatpush.msra.mxu0 0.0
    %254 = vmatpush.msra.mxu0 0.0
    %255 = vmatpush.msra.mxu0 0.0
    %256 = vmatpush.msra.mxu0 0.0
    %257 = vmatpush.msra.mxu0 0.0
    %258 = vmatpush.msra.mxu0 0.0
    %259 = vmatpush.msra.mxu0 0.0
    %260 = vmatpush.msra.mxu0 0.0
    %261 = vmatpush.msra.mxu0 0.0
    %262 = vmatpush.msra.mxu0 0.0
    %263 = vmatpush.msra.mxu0 0.0
    %264 = vmatpush.msra.mxu0 0.0
    %265 = vmatpush.msra.mxu0 %v249
    %266 = vmatpush.msra.mxu0 %v224
    %267 = vmatmul.f32.gmra.mxu0 %v153
    %v268 = vpop.f32.mrf.mxu0
    %v269 = vadd.f32 %v150, %v268
    %270 = vdwg.mxu0
    %s271 = scalar_lea.vmem [#allocation8], 4
    %272 = vst [vmem:[%s271] sm:$0xf] %v269
    // Predicated region
    $region34: #{tpu_custom_call.1} parent=1 // pred_check
      _
    $region35: #{tpu_custom_call.1} parent=1 // pred_check_branch
      %274 = sbr.rel (0) target = $region37
    $region36: #{tpu_custom_call.1} parent=1 // pred_region
      %276 = vsyncadd [#allocation4], 0
      %s277 = sshll.u32 [#allocation7], 4
      %s278 = int_to_ptr.vmem [resolvable:$true] %s277
      %s279 = sshll.u32 %s6, 4
      %s280 = int_to_ptr.hbm [resolvable:$true] %s279
      %285 = dma.vmem_to_hbm [thread:$0]  %s278, 128, %s280, [#allocation4], 64, 64, 4
    $region37: #{tpu_custom_call.1} parent=1 // pred_fallthru
      _
    // Predicated region
    $region38: #{tpu_custom_call.1} parent=1 // pred_check
      _
    $region39: #{tpu_custom_call.1} parent=1 // pred_check_branch
      %287 = sbr.rel (0) target = $region41
    $region40: #{tpu_custom_call.1} parent=1 // pred_region
      %289 = vsyncadd [#allocation9], 0
      %s290 = sshll.u32 [#allocation8], 4
      %s291 = int_to_ptr.vmem [resolvable:$true] %s290
      %s292 = sshll.u32 %s7, 4
      %s293 = int_to_ptr.hbm [resolvable:$true] %s292
      %298 = dma.vmem_to_hbm [thread:$0]  %s291, 128, %s293, [#allocation9], 64, 64, 4
    $region41: #{tpu_custom_call.1} parent=1 // pred_fallthru
      _
    // Predicated region
    $region42: #{tpu_custom_call.1} parent=1 // pred_check
      _
    $region43: #{tpu_custom_call.1} parent=1 // pred_check_branch
      %300 = sbr.rel (0) target = $region45
    $region44: #{tpu_custom_call.1} parent=1 // pred_region
      %302 = dma.done [#allocation4], 128
    $region45: #{tpu_custom_call.1} parent=1 // pred_fallthru
      _
    // Predicated region
    $region46: #{tpu_custom_call.1} parent=1 // pred_check
      _
    $region47: #{tpu_custom_call.1} parent=1 // pred_check_branch
      %304 = sbr.rel (0) target = $region49
    $region48: #{tpu_custom_call.1} parent=1 // pred_region
      %306 = dma.done [#allocation9], 128
    $region49: #{tpu_custom_call.1} parent=1 // pred_fallthru
      _
    %307 = vsyncpa [#allocation3], 1
    %308 = vsyncpa [#allocation6], 1
    %309 = vsyncpa [#allocation4], 1
    %310 = vsyncpa [#allocation9], 1

</llo_original>
